<compile_context>
chip_gen: v5e
topology: v5e:2x2
jax: 0.10.0
libtpu: 0.0.40
codegen_flags: <defaults>
</compile_context>

<pallas_src>
import jax
import jax.numpy as jnp
from jax.experimental import pallas as pl
from jax.experimental.pallas import tpu as pltpu

D_IN, D_HID, D_OUT = 10, 10, 5


def _round_up(n, m):
    return -(-n // m) * m


def toy_mlp_kernel(x_ref, w1_ref, b1_ref, w2_ref, b2_ref, o_ref):
    # f32 end-to-end: MXU matmuls with f32 accumulation, f32 bias + ReLU epilogue.
    h = jnp.dot(x_ref[...], w1_ref[...], preferred_element_type=jnp.float32)
    h = jnp.maximum(h + b1_ref[...], 0.0)                       # (tb,10) + (1,10)
    o_ref[...] = (jnp.dot(h, w2_ref[...], preferred_element_type=jnp.float32)
                  + b2_ref[...])                                # (tb,5)  + (1,5)


def toy_model_forward(x, w1, b1, w2, b2, *, block_b=8192):
    """x: (B,10) f32; w1: (10,10); b1: (10,); w2: (10,5); b2: (5,). Returns (B,5) f32."""
    B = x.shape[0]

    # Batch tile: multiple of 8 (sublane); large so per-step bytes amortize the
    # ~0.35us fixed grid-step overhead. block_b is the per-generation tunable.
    block_b = max(8, _round_up(block_b, 8))
    tb = min(block_b, max(8, _round_up(B, 8)))
    n_blocks = pl.cdiv(B, tb)
    b_pad = n_blocks * tb

    # No wrapper cast. Pad rows only if the last tile is ragged (<= tb-1 rows);
    # padded rows produce garbage that is sliced off after the kernel.
    x_in = x if b_pad == B else jnp.pad(x, ((0, b_pad - B), (0, 0)))

    b1_2d = b1.reshape(1, D_HID)
    b2_2d = b2.reshape(1, D_OUT)

    # Weights/biases: constant block index -> fetched once, stay VMEM-resident.
    resident = lambda shape: pl.BlockSpec(shape, lambda i: (0,) * len(shape))

    # Real (unpadded) work for XLA's scheduler (advisory).
    flops = 2 * B * (D_IN * D_HID + D_HID * D_OUT)
    bytes_accessed = (B * D_IN * 4 + B * D_OUT * 4
                      + (D_IN * D_HID + D_HID + D_HID * D_OUT + D_OUT) * 4)

    # VMEM budget: x and out tiles are lane-padded (10->128, 5->128) f32 and
    # double-buffered; cap at 48 MiB so we stay inside v7x's 64 MiB physical VMEM.
    tile_vmem = 2 * 2 * tb * 128 * 4
    vmem_limit = int(min(max(tile_vmem + (4 << 20), 32 << 20), 48 << 20))

    out = pl.pallas_call(
        toy_mlp_kernel,
        out_shape=jax.ShapeDtypeStruct((b_pad, D_OUT), jnp.float32),
        grid_spec=pltpu.PrefetchScalarGridSpec(
            num_scalar_prefetch=0,
            grid=(n_blocks,),
            in_specs=[
                pl.BlockSpec((tb, D_IN), lambda i: (i, 0)),     # x tile streams
                resident((D_IN, D_HID)),                        # W1 (resident)
                resident((1, D_HID)),                           # b1 (resident)
                resident((D_HID, D_OUT)),                       # W2 (resident)
                resident((1, D_OUT)),                           # b2 (resident)
            ],
            out_specs=pl.BlockSpec((tb, D_OUT), lambda i: (i, 0)),
        ),
        compiler_params=pltpu.CompilerParams(
            dimension_semantics=("parallel",),                  # v7x: 2 TCs on batch
            vmem_limit_bytes=vmem_limit),
        cost_estimate=pl.CostEstimate(
            flops=flops, transcendentals=0, bytes_accessed=bytes_accessed),
    )(x_in, w1, b1_2d, w2, b2_2d)

    return out if b_pad == B else out[:B]


if __name__ == "__main__":
    key = jax.random.PRNGKey(0)
    kx, k1, k2, k3, k4 = jax.random.split(key, 5)

    B = 8
    x = jax.random.normal(kx, (B, D_IN), dtype=jnp.float32)

    # Deterministic param init (torch-Linear-like bound 1/sqrt(fan_in)).
    bound1 = 1.0 / jnp.sqrt(D_IN)
    w1 = jax.random.uniform(k1, (D_IN, D_HID), jnp.float32, -bound1, bound1)
    b1 = jax.random.uniform(k2, (D_HID,), jnp.float32, -bound1, bound1)
    bound2 = 1.0 / jnp.sqrt(D_HID)
    w2 = jax.random.uniform(k3, (D_IN, D_OUT), jnp.float32, -bound2, bound2)
    b2 = jax.random.uniform(k4, (D_OUT,), jnp.float32, -bound2, bound2)

    out = jax.block_until_ready(toy_model_forward(x, w1, b1, w2, b2))
    assert out.shape == (B, D_OUT)

    # Pure-f32 reference (mirrors the PyTorch ToyModel forward).
    ref = jnp.maximum(x @ w1 + b1, 0.0) @ w2 + b2
    assert jnp.allclose(out, ref, atol=1e-3, rtol=1e-3)

    # Ragged-tail path: B not a multiple of the 8-row sublane tile.
    B2 = 13
    x2 = jax.random.normal(k3, (B2, D_IN), dtype=jnp.float32)
    out2 = jax.block_until_ready(toy_model_forward(x2, w1, b1, w2, b2))
    ref2 = jnp.maximum(x2 @ w1 + b1, 0.0) @ w2 + b2
    assert out2.shape == (B2, D_OUT)
    assert jnp.allclose(out2, ref2, atol=1e-3, rtol=1e-3)

    print("KERNEL_OK")
</pallas_src>

<mosaic_0001>
module attributes {stable_mosaic.version = 11 : i64} {
  func.func @toy_mlp_kernel(%arg0: i32, %arg1: memref<8x10xf32, #tpu.memory_space<vmem>>, %arg2: memref<10x10xf32, #tpu.memory_space<vmem>>, %arg3: memref<1x10xf32, #tpu.memory_space<vmem>>, %arg4: memref<10x5xf32, #tpu.memory_space<vmem>>, %arg5: memref<1x5xf32, #tpu.memory_space<vmem>>, %arg6: memref<8x5xf32, #tpu.memory_space<vmem>>) attributes {dimension_semantics = [#tpu.dimension_semantics<parallel>], iteration_bounds = array<i64: 1>, scalar_prefetch = 0 : i64, scratch_operands = 0 : i64, tpu.core_type = #tpu.core_type<tc>, window_params = [{transform_indices = @transform_0, window_bounds = array<i64: 8, 10>}, {pipeline_mode = #tpu.pipeline_mode<synchronous>, transform_indices = @transform_1, window_bounds = array<i64: 10, 10>}, {pipeline_mode = #tpu.pipeline_mode<synchronous>, transform_indices = @transform_2, window_bounds = array<i64: 1, 10>}, {pipeline_mode = #tpu.pipeline_mode<synchronous>, transform_indices = @transform_3, window_bounds = array<i64: 10, 5>}, {pipeline_mode = #tpu.pipeline_mode<synchronous>, transform_indices = @transform_4, window_bounds = array<i64: 1, 5>}, {transform_indices = @transform_5, window_bounds = array<i64: 8, 5>}]} {
    %c0 = arith.constant 0 : index
    %c0_0 = arith.constant 0 : index
    %0 = vector.load %arg1[%c0, %c0_0] : memref<8x10xf32, #tpu.memory_space<vmem>>, vector<8x10xf32>
    %c0_1 = arith.constant 0 : index
    %c0_2 = arith.constant 0 : index
    %1 = vector.load %arg2[%c0_1, %c0_2] : memref<10x10xf32, #tpu.memory_space<vmem>>, vector<10x10xf32>
    %cst = arith.constant dense<0.000000e+00> : vector<8x10xf32>
    %2 = tpu.matmul %0, %1, %cst {dimension_numbers = #tpu.dot_dimension_numbers<[1], [0], [0], [1], [0, 0, 1, 1], [], []>} : vector<8x10xf32>, vector<10x10xf32>, vector<8x10xf32> -> vector<8x10xf32>
    %c0_3 = arith.constant 0 : index
    %c0_4 = arith.constant 0 : index
    %3 = vector.load %arg3[%c0_3, %c0_4] : memref<1x10xf32, #tpu.memory_space<vmem>>, vector<1x10xf32>
    %4 = vector.broadcast %3 : vector<1x10xf32> to vector<8x10xf32>
    %5 = arith.addf %2, %4 : vector<8x10xf32>
    %cst_5 = arith.constant 0.000000e+00 : f32
    %6 = vector.broadcast %cst_5 : f32 to vector<8x10xf32>
    %7 = arith.maximumf %5, %6 : vector<8x10xf32>
    %c0_6 = arith.constant 0 : index
    %c0_7 = arith.constant 0 : index
    %8 = vector.load %arg4[%c0_6, %c0_7] : memref<10x5xf32, #tpu.memory_space<vmem>>, vector<10x5xf32>
    %cst_8 = arith.constant dense<0.000000e+00> : vector<8x5xf32>
    %9 = tpu.matmul %7, %8, %cst_8 {dimension_numbers = #tpu.dot_dimension_numbers<[1], [0], [0], [1], [0, 0, 1, 1], [], []>} : vector<8x10xf32>, vector<10x5xf32>, vector<8x5xf32> -> vector<8x5xf32>
    %c0_9 = arith.constant 0 : index
    %c0_10 = arith.constant 0 : index
    %10 = vector.load %arg5[%c0_9, %c0_10] : memref<1x5xf32, #tpu.memory_space<vmem>>, vector<1x5xf32>
    %11 = vector.broadcast %10 : vector<1x5xf32> to vector<8x5xf32>
    %12 = arith.addf %9, %11 : vector<8x5xf32>
    %c0_11 = arith.constant 0 : index
    %c0_12 = arith.constant 0 : index
    %13 = vector.load %arg6[%c0_11, %c0_12] : memref<8x5xf32, #tpu.memory_space<vmem>>, vector<8x5xf32>
    tpu.vector_store %arg6[%c0_11, %c0_12], %12 {strides = array<i32>} : memref<8x5xf32, #tpu.memory_space<vmem>>, vector<8x5xf32>,
    return
  }
  func.func @transform_0(%arg0: i32) -> (i32, i32) {
    %c0_i32 = arith.constant 0 : i32
    %c0_i32_0 = arith.constant 0 : i32
    return %arg0, %c0_i32 : i32, i32
  }
  func.func @transform_1(%arg0: i32) -> (i32, i32) {
    %c0_i32 = arith.constant 0 : i32
    %c0_i32_0 = arith.constant 0 : i32
    %c0_i32_1 = arith.constant 0 : i32
    return %c0_i32, %c0_i32_0 : i32, i32
  }
  func.func @transform_2(%arg0: i32) -> (i32, i32) {
    %c0_i32 = arith.constant 0 : i32
    %c0_i32_0 = arith.constant 0 : i32
    %c0_i32_1 = arith.constant 0 : i32
    return %c0_i32, %c0_i32_0 : i32, i32
  }
  func.func @transform_3(%arg0: i32) -> (i32, i32) {
    %c0_i32 = arith.constant 0 : i32
    %c0_i32_0 = arith.constant 0 : i32
    %c0_i32_1 = arith.constant 0 : i32
    return %c0_i32, %c0_i32_0 : i32, i32
  }
  func.func @transform_4(%arg0: i32) -> (i32, i32) {
    %c0_i32 = arith.constant 0 : i32
    %c0_i32_0 = arith.constant 0 : i32
    %c0_i32_1 = arith.constant 0 : i32
    return %c0_i32, %c0_i32_0 : i32, i32
  }
  func.func @transform_5(%arg0: i32) -> (i32, i32) {
    %c0_i32 = arith.constant 0 : i32
    %c0_i32_0 = arith.constant 0 : i32
    return %arg0, %c0_i32 : i32, i32
  }
}

</mosaic_0001>

<llo_original>
// kernel: tpu_custom_call.1
$region0: #{tpu_custom_call.1}
  #allocation0 [shape = 'u32[]', space=smem, size = 0x4, offset = 0x4, fixed_abs, tag = 'smem constant byte address 0x4 - core index']
  #allocation1 [shape = 'u32[72,128]{1,0:T(1,128)}', space=vmem, size = 0x9000, scoped, tag = 'internal scratch']
  %s0 = inlined_call_operand.vmem [shape: f32[8,10], index: 0, kind: input, shape index: {}]
  %s1 = inlined_call_operand.vmem [shape: f32[10,10], index: 1, kind: input, shape index: {}]
  %s2 = inlined_call_operand.vmem [shape: f32[1,10], index: 2, kind: input, shape index: {}]
  %s3 = inlined_call_operand.vmem [shape: f32[10,5], index: 3, kind: input, shape index: {}]
  %s4 = inlined_call_operand.vmem [shape: f32[1,5], index: 4, kind: input, shape index: {}]
  %s5 = inlined_call_operand.hbm [shape: f32[8,5], index: 5, kind: output, shape index: {}]
  %s6 = sld [smem:[#allocation0]]
  $region30: #{tpu_custom_call.1} parent=0
    _
  %s8 = ssub.s32 1, %s6
  %s9 = scalar_select 0, %s8, %s6
  $region1: #{tpu_custom_call.1} parent=0
    #allocation2 [shape = 'u8[4096]{0}', space=vmem, size = 0x1000, scoped, tag = 'output window, operand 0, single buffered']
    #allocation3 [shape = 's32[1]{0}', space=sflag, size = 0x4, scoped, tag = 'scoped memory for tpu_custom_call.1']
    %10 = vsyncpa [#allocation3], 0
    // Predicated region
    $region2: #{tpu_custom_call.1} parent=1 // pred_check
      _
    $region3: #{tpu_custom_call.1} parent=1 // pred_check_branch
      %12 = sbr.rel (0) target = $region5
    $region4: #{tpu_custom_call.1} parent=1 // pred_region
      _
    $region5: #{tpu_custom_call.1} parent=1 // pred_fallthru
      _
    // Predicated region
    $region6: #{tpu_custom_call.1} parent=1 // pred_check
      _
    $region7: #{tpu_custom_call.1} parent=1 // pred_check_branch
      %14 = sbr.rel (0) target = $region9
    $region8: #{tpu_custom_call.1} parent=1 // pred_region
      _
    $region9: #{tpu_custom_call.1} parent=1 // pred_fallthru
      _
    // Predicated region
    $region10: #{tpu_custom_call.1} parent=1 // pred_check
      _
    $region11: #{tpu_custom_call.1} parent=1 // pred_check_branch
      %16 = sbr.rel (0) target = $region13
    $region12: #{tpu_custom_call.1} parent=1 // pred_region
      _
    $region13: #{tpu_custom_call.1} parent=1 // pred_fallthru
      _
    // Predicated region
    $region14: #{tpu_custom_call.1} parent=1 // pred_check
      _
    $region15: #{tpu_custom_call.1} parent=1 // pred_check_branch
      %18 = sbr.rel (0) target = $region17
    $region16: #{tpu_custom_call.1} parent=1 // pred_region
      _
    $region17: #{tpu_custom_call.1} parent=1 // pred_fallthru
      _
    // Predicated region
    $region18: #{tpu_custom_call.1} parent=1 // pred_check
      _
    $region19: #{tpu_custom_call.1} parent=1 // pred_check_branch
      %20 = sbr.rel (0) target = $region21
    $region20: #{tpu_custom_call.1} parent=1 // pred_region
      _
    $region21: #{tpu_custom_call.1} parent=1 // pred_fallthru
      _
    %v21 = vld [vmem:[%s0] sm:$0xff]
    %v22 = vld [vmem:[%s1] sm:$0xff]
    %v23 = vld [vmem:[%s1 + $0x8] sm:$0x3]
    %v24 = vld [vmem:[%s2] sm:$0x1]
    %v26 = vperm.slane %v24, 0
    %vm28 = vcmask 80896
    %v30 = vsel %vm28, %v21, 0
    %vm32 = vcmask 1041408
    %v34 = vsel %vm32, %v23, 0
    %36 = vmatpush.msra.mxu0 0.0
    %37 = vmatpush.msra.mxu0 0.0
    %38 = vmatpush.msra.mxu0 0.0
    %39 = vmatpush.msra.mxu0 0.0
    %40 = vmatpush.msra.mxu0 0.0
    %41 = vmatpush.msra.mxu0 0.0
    %42 = vmatpush.msra.mxu0 0.0
    %43 = vmatpush.msra.mxu0 0.0
    %44 = vmatpush.msra.mxu0 0.0
    %45 = vmatpush.msra.mxu0 0.0
    %46 = vmatpush.msra.mxu0 0.0
    %47 = vmatpush.msra.mxu0 0.0
    %48 = vmatpush.msra.mxu0 0.0
    %49 = vmatpush.msra.mxu0 0.0
    %50 = vmatpush.msra.mxu0 %v34
    %51 = vmatpush.msra.mxu0 %v22
    %52 = vmatmul.f32.gmra.mxu0 %v30
    %v53 = vpop.f32.mrf.mxu0
    %v54 = vadd.f32 %v26, %v53
    %55 = vdwg.mxu0
    %v56 = vmax.f32 %v54, 0.0
    %v57 = vld [vmem:[%s3] sm:$0xff]
    %v58 = vld [vmem:[%s3 + $0x8] sm:$0x3]
    %v59 = vld [vmem:[%s4] sm:$0x1]
    %v61 = vperm.slane %v59, 0
    %v64 = vsel %vm28, %v56, 0
    %v67 = vsel %vm32, %v58, 0
    %69 = vmatpush.msra.mxu0 0.0
    %70 = vmatpush.msra.mxu0 0.0
    %71 = vmatpush.msra.mxu0 0.0
    %72 = vmatpush.msra.mxu0 0.0
    %73 = vmatpush.msra.mxu0 0.0
    %74 = vmatpush.msra.mxu0 0.0
    %75 = vmatpush.msra.mxu0 0.0
    %76 = vmatpush.msra.mxu0 0.0
    %77 = vmatpush.msra.mxu0 0.0
    %78 = vmatpush.msra.mxu0 0.0
    %79 = vmatpush.msra.mxu0 0.0
    %80 = vmatpush.msra.mxu0 0.0
    %81 = vmatpush.msra.mxu0 0.0
    %82 = vmatpush.msra.mxu0 0.0
    %83 = vmatpush.msra.mxu0 %v67
    %84 = vmatpush.msra.mxu0 %v57
    %85 = vmatmul.f32.gmra.mxu0 %v64
    %v86 = vpop.f32.mrf.mxu0
    %v87 = vadd.f32 %v61, %v86
    %88 = vdwg.mxu0
    %vm89 = vcmask 39936
    %90 = vst.msk [vmem:[#allocation2] sm:$0xff] %vm89, %v87
    // Predicated region
    $region22: #{tpu_custom_call.1} parent=1 // pred_check
      _
    $region23: #{tpu_custom_call.1} parent=1 // pred_check_branch
      %92 = sbr.rel (0) target = $region25
    $region24: #{tpu_custom_call.1} parent=1 // pred_region
      %94 = vsyncadd [#allocation3], 0
      %s96 = sshll.u32 [#allocation2], 4
      %s97 = int_to_ptr.vmem [resolvable:$true] %s96
      %s98 = sshll.u32 %s5, 4
      %s99 = int_to_ptr.hbm [resolvable:$true] %s98
      %101 = dma.vmem_to_hbm [thread:$0]  %s97, 128, %s99, [#allocation3]
    $region25: #{tpu_custom_call.1} parent=1 // pred_fallthru
      _
    // Predicated region
    $region26: #{tpu_custom_call.1} parent=1 // pred_check
      _
    $region27: #{tpu_custom_call.1} parent=1 // pred_check_branch
      %103 = sbr.rel (0) target = $region29
    $region28: #{tpu_custom_call.1} parent=1 // pred_region
      %105 = dma.done [#allocation3], 128
    $region29: #{tpu_custom_call.1} parent=1 // pred_fallthru
      _
    %106 = vsyncpa [#allocation3], 1

</llo_original>
